<compile_context>
chip_gen: v5e
topology: v5e:2x2
jax: 0.10.0
libtpu: 0.0.40
codegen_flags: <defaults>
</compile_context>

<pallas_src>
import functools

import jax
import jax.numpy as jnp
from jax.experimental import pallas as pl
from jax.experimental.pallas import tpu as pltpu

EPS = 1e-5
H_PAD = 128                 # padded hidden width (100 -> 128, 80 -> 128)
W_ROWS = 8 + H_PAD + H_PAD  # packed parameter slab rows: W1aug | W2aug | W3aug = 264


def _round_up(n, m):
    return ((n + m - 1) // m) * m


def mlp_kernel(x_ref, w_ref, o_ref, *, dot_dtype):
    # x tile: (TB, 8) f32, column 7 == 1.0 (bias lane)
    x = x_ref[...].astype(dot_dtype)

    # Packed, BN-folded, bias-augmented parameter slab (static sublane-aligned slices).
    w1 = w_ref[0:8, :].astype(dot_dtype)        # (8, 128)   row 7 = folded bias, [7,127]=1
    w2 = w_ref[8:136, :].astype(dot_dtype)      # (128, 128) row 127 = b2, [127,127]=1
    w3 = w_ref[136:264, :].astype(dot_dtype)    # (128, 128) col 0 valid, row 127 = b3

    h1 = jnp.maximum(jnp.dot(x, w1, preferred_element_type=jnp.float32), 0.0)
    h2 = jnp.maximum(
        jnp.dot(h1.astype(dot_dtype), w2, preferred_element_type=jnp.float32), 0.0)
    y = jnp.dot(h2.astype(dot_dtype), w3, preferred_element_type=jnp.float32)

    o_ref[...] = y.astype(o_ref.dtype)          # lane-dense (TB, 128), col 0 = output


def modelo_forward(x, params, *, tb=1024, dot_dtype=jnp.float32):
    """x: (B, 7) f32. Returns (B, 1) f32."""
    w1, b1, w2, b2, w3, b3 = params
    B, F = x.shape
    assert F == 7
    x = x.astype(jnp.float32)

    # ---- BatchNorm1d(7), training mode: full-batch mean / biased variance (XLA) ----
    mean = jnp.mean(x, axis=0)                           # (7,)
    var = jnp.mean((x - mean) ** 2, axis=0)              # biased variance
    scale = jax.lax.rsqrt(var + EPS)                     # (7,)

    # ---- fold BN into layer 1, pad to 128 lanes, pack everything into one slab ----
    w1f = scale[:, None] * w1                            # (7, 100)
    b1f = b1.reshape(-1) - (mean * scale) @ w1           # (100,)

    w1a = jnp.zeros((8, H_PAD), jnp.float32)
    w1a = w1a.at[0:7, 0:100].set(w1f)
    w1a = w1a.at[7, 0:100].set(b1f)                      # bias row (hits the x ones column)
    w1a = w1a.at[7, 127].set(1.0)                        # => h1[:, 127] == 1

    w2a = jnp.zeros((H_PAD, H_PAD), jnp.float32)
    w2a = w2a.at[0:100, 0:80].set(w2)
    w2a = w2a.at[127, 0:80].set(b2.reshape(-1))          # b2 via the constant-1 lane
    w2a = w2a.at[127, 127].set(1.0)                      # => h2[:, 127] == 1

    w3a = jnp.zeros((H_PAD, 128), jnp.float32)
    w3a = w3a.at[0:80, 0].set(w3.reshape(-1))
    w3a = w3a.at[127, 0].set(b3.reshape(()))             # b3 via the constant-1 lane

    w_slab = jnp.concatenate([w1a, w2a, w3a], axis=0)    # (264, 128): one resident DMA

    # ---- batch tiling + bias lane for x ----
    tb = max(8, min(tb, _round_up(B, 8)))
    b_pad = _round_up(B, tb)
    ones = jnp.ones((B, 1), jnp.float32)
    x_aug = jnp.concatenate([x, ones], axis=1)           # (B, 8), col 7 == 1
    x_aug = jnp.pad(x_aug, ((0, b_pad - B), (0, 0)))     # padded rows are sliced away below

    grid = (b_pad // tb,)
    out = pl.pallas_call(
        functools.partial(mlp_kernel, dot_dtype=dot_dtype),
        out_shape=jax.ShapeDtypeStruct((b_pad, 128), jnp.float32),
        grid=grid,
        in_specs=[
            pl.BlockSpec((tb, 8), lambda i: (i, 0)),          # streamed x tiles
            pl.BlockSpec((W_ROWS, 128), lambda i: (0, 0)),    # grid-invariant weight slab
        ],
        out_specs=pl.BlockSpec((tb, 128), lambda i: (i, 0)),  # lane-dense output
        compiler_params=pltpu.CompilerParams(
            dimension_semantics=("parallel",)),               # shard batch across TCs
    )(x_aug, w_slab)

    return out[:B, 0:1]


def init_params(key):
    """Deterministic init mimicking PyTorch Linear default (U[-1/sqrt(fan_in), +])."""
    def linear(key, fan_in, fan_out):
        kw, kb = jax.random.split(key)
        bound = 1.0 / jnp.sqrt(float(fan_in))
        w = jax.random.uniform(kw, (fan_in, fan_out), jnp.float32, -bound, bound)
        b = jax.random.uniform(kb, (1, fan_out), jnp.float32, -bound, bound)
        return w, b

    k1, k2, k3 = jax.random.split(key, 3)
    w1, b1 = linear(k1, 7, 100)
    w2, b2 = linear(k2, 100, 80)
    w3, b3 = linear(k3, 80, 1)
    return (w1, b1, w2, b2, w3, b3)


def reference_forward(x, params):
    """Pure-JAX reference (mirrors the PyTorch forward exactly)."""
    w1, b1, w2, b2, w3, b3 = params
    mean = jnp.mean(x, axis=0, keepdims=True)
    var = jnp.mean((x - mean) ** 2, axis=0, keepdims=True)    # biased batch variance
    xn = (x - mean) / jnp.sqrt(var + EPS)
    h1 = jnp.maximum(xn @ w1 + b1, 0.0)
    h2 = jnp.maximum(h1 @ w2 + b2, 0.0)
    return h2 @ w3 + b3


if __name__ == "__main__":
    key = jax.random.PRNGKey(0)
    kx, kp, kx2 = jax.random.split(key, 3)

    params = init_params(kp)

    # Small batch (single grid step, block == full array).
    B = 8
    x = jax.random.normal(kx, (B, 7), dtype=jnp.float32)
    y = modelo_forward(x, params)
    jax.block_until_ready(y)
    y_ref = reference_forward(x, params)
    assert y.shape == (B, 1)
    assert jnp.allclose(y, y_ref, atol=1e-4, rtol=1e-4), "mismatch vs JAX reference (B=8)"

    # Multi-tile batch exercising the pipelined "parallel" grid (2 tiles of 128 rows).
    B2 = 256
    x2 = jax.random.normal(kx2, (B2, 7), dtype=jnp.float32)
    y2 = modelo_forward(x2, params, tb=128)
    jax.block_until_ready(y2)
    y2_ref = reference_forward(x2, params)
    assert y2.shape == (B2, 1)
    assert jnp.allclose(y2, y2_ref, atol=1e-4, rtol=1e-4), "mismatch vs JAX reference (B=256)"

    print("KERNEL_OK")
</pallas_src>

<mosaic_0001>
module attributes {stable_mosaic.version = 11 : i64} {
  func.func @mlp_kernel(%arg0: i32, %arg1: memref<8x8xf32, #tpu.memory_space<vmem>>, %arg2: memref<264x128xf32, #tpu.memory_space<vmem>>, %arg3: memref<8x128xf32, #tpu.memory_space<vmem>>) attributes {dimension_semantics = [#tpu.dimension_semantics<parallel>], iteration_bounds = array<i64: 1>, scalar_prefetch = 0 : i64, scratch_operands = 0 : i64, tpu.core_type = #tpu.core_type<tc>, window_params = [{transform_indices = @transform_0, window_bounds = array<i64: 8, 8>}, {pipeline_mode = #tpu.pipeline_mode<synchronous>, transform_indices = @transform_1, window_bounds = array<i64: 264, 128>}, {transform_indices = @transform_2, window_bounds = array<i64: 8, 128>}]} {
    %c0 = arith.constant 0 : index
    %c0_0 = arith.constant 0 : index
    %0 = vector.load %arg1[%c0, %c0_0] : memref<8x8xf32, #tpu.memory_space<vmem>>, vector<8x8xf32>
    %c0_1 = arith.constant 0 : index
    %c0_2 = arith.constant 0 : index
    %1 = vector.load %arg2[%c0_1, %c0_2] : memref<264x128xf32, #tpu.memory_space<vmem>>, vector<8x128xf32>
    %c8 = arith.constant 8 : index
    %c0_3 = arith.constant 0 : index
    %2 = vector.load %arg2[%c8, %c0_3] : memref<264x128xf32, #tpu.memory_space<vmem>>, vector<128x128xf32>
    %c136 = arith.constant 136 : index
    %c0_4 = arith.constant 0 : index
    %3 = vector.load %arg2[%c136, %c0_4] : memref<264x128xf32, #tpu.memory_space<vmem>>, vector<128x128xf32>
    %cst = arith.constant dense<0.000000e+00> : vector<8x128xf32>
    %4 = tpu.matmul %0, %1, %cst {dimension_numbers = #tpu.dot_dimension_numbers<[1], [0], [0], [1], [0, 0, 1, 1], [], []>} : vector<8x8xf32>, vector<8x128xf32>, vector<8x128xf32> -> vector<8x128xf32>
    %cst_5 = arith.constant 0.000000e+00 : f32
    %5 = vector.broadcast %cst_5 : f32 to vector<8x128xf32>
    %6 = arith.maximumf %4, %5 : vector<8x128xf32>
    %cst_6 = arith.constant dense<0.000000e+00> : vector<8x128xf32>
    %7 = tpu.matmul %6, %2, %cst_6 {dimension_numbers = #tpu.dot_dimension_numbers<[1], [0], [0], [1], [0, 0, 1, 1], [], []>} : vector<8x128xf32>, vector<128x128xf32>, vector<8x128xf32> -> vector<8x128xf32>
    %cst_7 = arith.constant 0.000000e+00 : f32
    %8 = vector.broadcast %cst_7 : f32 to vector<8x128xf32>
    %9 = arith.maximumf %7, %8 : vector<8x128xf32>
    %cst_8 = arith.constant dense<0.000000e+00> : vector<8x128xf32>
    %10 = tpu.matmul %9, %3, %cst_8 {dimension_numbers = #tpu.dot_dimension_numbers<[1], [0], [0], [1], [0, 0, 1, 1], [], []>} : vector<8x128xf32>, vector<128x128xf32>, vector<8x128xf32> -> vector<8x128xf32>
    %c0_9 = arith.constant 0 : index
    %c0_10 = arith.constant 0 : index
    %11 = vector.load %arg3[%c0_9, %c0_10] : memref<8x128xf32, #tpu.memory_space<vmem>>, vector<8x128xf32>
    tpu.vector_store %arg3[%c0_9, %c0_10], %10 {strides = array<i32>} : memref<8x128xf32, #tpu.memory_space<vmem>>, vector<8x128xf32>,
    return
  }
  func.func @transform_0(%arg0: i32) -> (i32, i32) {
    %c0_i32 = arith.constant 0 : i32
    %c0_i32_0 = arith.constant 0 : i32
    return %arg0, %c0_i32 : i32, i32
  }
  func.func @transform_1(%arg0: i32) -> (i32, i32) {
    %c0_i32 = arith.constant 0 : i32
    %c0_i32_0 = arith.constant 0 : i32
    %c0_i32_1 = arith.constant 0 : i32
    return %c0_i32, %c0_i32_0 : i32, i32
  }
  func.func @transform_2(%arg0: i32) -> (i32, i32) {
    %c0_i32 = arith.constant 0 : i32
    %c0_i32_0 = arith.constant 0 : i32
    return %arg0, %c0_i32 : i32, i32
  }
}

</mosaic_0001>

<llo_original>
// kernel: tpu_custom_call.1
$region0: #{tpu_custom_call.1}
  #allocation0 [shape = 'u32[]', space=smem, size = 0x4, offset = 0x4, fixed_abs, tag = 'smem constant byte address 0x4 - core index']
  #allocation1 [shape = 'u32[72,128]{1,0:T(1,128)}', space=vmem, size = 0x9000, scoped, tag = 'internal scratch']
  %s0 = inlined_call_operand.hbm [shape: f32[8,8], index: 0, kind: input, shape index: {}]
  %s1 = inlined_call_operand.hbm [shape: f32[264,128], index: 1, kind: input, shape index: {}]
  %s2 = inlined_call_operand.hbm [shape: f32[8,128], index: 2, kind: output, shape index: {}]
  %s3 = sld [smem:[#allocation0]]
  $region26: #{tpu_custom_call.1} parent=0
    _
  %s5 = ssub.s32 1, %s3
  %s6 = scalar_select 0, %s5, %s3
  $region1: #{tpu_custom_call.1} parent=0
    #allocation2 [shape = 'u8[4096]{0}', space=vmem, size = 0x1000, scoped, tag = 'input window, operand 0, single buffered']
    #allocation3 [shape = 's32[1]{0}', space=sflag, size = 0x4, scoped, tag = 'scoped memory for tpu_custom_call.1']
    #allocation4 [shape = 's32[1]{0}', space=sflag, size = 0x4, scoped, tag = 'scoped memory for tpu_custom_call.1']
    #allocation5 [shape = 'u8[135168]{0}', space=vmem, size = 0x21000, scoped, tag = 'input window, operand 1, single buffered']
    #allocation6 [shape = 's32[1]{0}', space=sflag, size = 0x4, scoped, tag = 'scoped memory for tpu_custom_call.1']
    #allocation7 [shape = 'u8[4096]{0}', space=vmem, size = 0x1000, scoped, tag = 'output window, operand 0, single buffered']
    %7 = vsyncpa [#allocation3], 0
    %8 = vsyncpa [#allocation6], 0
    %9 = vsyncpa [#allocation4], 0
    // Predicated region
    $region2: #{tpu_custom_call.1} parent=1 // pred_check
      _
    $region3: #{tpu_custom_call.1} parent=1 // pred_check_branch
      %11 = sbr.rel (0) target = $region5
    $region4: #{tpu_custom_call.1} parent=1 // pred_region
      %13 = vsyncadd [#allocation3], 0
      %s15 = sshll.u32 %s0, 4
      %s16 = int_to_ptr.hbm [resolvable:$true] %s15
      %s17 = sshll.u32 [#allocation2], 4
      %s18 = int_to_ptr.vmem [resolvable:$true] %s17
      %20 = dma.hbm_to_vmem [thread:$0]  %s16, 128, %s18, [#allocation3]
    $region5: #{tpu_custom_call.1} parent=1 // pred_fallthru
      _
    // Predicated region
    $region6: #{tpu_custom_call.1} parent=1 // pred_check
      _
    $region7: #{tpu_custom_call.1} parent=1 // pred_check_branch
      %22 = sbr.rel (0) target = $region9
    $region8: #{tpu_custom_call.1} parent=1 // pred_region
      %24 = vsyncadd [#allocation6], 0
      %s25 = sshll.u32 %s1, 4
      %s26 = int_to_ptr.hbm [resolvable:$true] %s25
      %s27 = sshll.u32 [#allocation5], 4
      %s28 = int_to_ptr.vmem [resolvable:$true] %s27
      %33 = dma.hbm_to_vmem [thread:$0]  %s26, 4224, %s28, [#allocation6], 128, 128, 8
    $region9: #{tpu_custom_call.1} parent=1 // pred_fallthru
      _
    // Predicated region
    $region10: #{tpu_custom_call.1} parent=1 // pred_check
      _
    $region11: #{tpu_custom_call.1} parent=1 // pred_check_branch
      %35 = sbr.rel (0) target = $region13
    $region12: #{tpu_custom_call.1} parent=1 // pred_region
      %37 = dma.done [#allocation3], 128
    $region13: #{tpu_custom_call.1} parent=1 // pred_fallthru
      _
    // Predicated region
    $region14: #{tpu_custom_call.1} parent=1 // pred_check
      _
    $region15: #{tpu_custom_call.1} parent=1 // pred_check_branch
      %39 = sbr.rel (0) target = $region17
    $region16: #{tpu_custom_call.1} parent=1 // pred_region
      %41 = dma.done [#allocation6], 4224
    $region17: #{tpu_custom_call.1} parent=1 // pred_fallthru
      _
    %v42 = vld [vmem:[#allocation2] sm:$0xff]
    %v43 = vld [vmem:[#allocation5] sm:$0xff]
    %v44 = vld [vmem:[#allocation5 + $0x8] sm:$0xff]
    %v45 = vld [vmem:[#allocation5 + $0x10] sm:$0xff]
    %v46 = vld [vmem:[#allocation5 + $0x18] sm:$0xff]
    %v47 = vld [vmem:[#allocation5 + $0x20] sm:$0xff]
    %v48 = vld [vmem:[#allocation5 + $0x28] sm:$0xff]
    %v49 = vld [vmem:[#allocation5 + $0x30] sm:$0xff]
    %v50 = vld [vmem:[#allocation5 + $0x38] sm:$0xff]
    %v51 = vld [vmem:[#allocation5 + $0x40] sm:$0xff]
    %v52 = vld [vmem:[#allocation5 + $0x48] sm:$0xff]
    %v53 = vld [vmem:[#allocation5 + $0x50] sm:$0xff]
    %v54 = vld [vmem:[#allocation5 + $0x58] sm:$0xff]
    %v55 = vld [vmem:[#allocation5 + $0x60] sm:$0xff]
    %v56 = vld [vmem:[#allocation5 + $0x68] sm:$0xff]
    %v57 = vld [vmem:[#allocation5 + $0x70] sm:$0xff]
    %v58 = vld [vmem:[#allocation5 + $0x78] sm:$0xff]
    %v59 = vld [vmem:[#allocation5 + $0x80] sm:$0xff]
    %v60 = vld [vmem:[#allocation5 + $0x88] sm:$0xff]
    %v61 = vld [vmem:[#allocation5 + $0x90] sm:$0xff]
    %v62 = vld [vmem:[#allocation5 + $0x98] sm:$0xff]
    %v63 = vld [vmem:[#allocation5 + $0xa0] sm:$0xff]
    %v64 = vld [vmem:[#allocation5 + $0xa8] sm:$0xff]
    %v65 = vld [vmem:[#allocation5 + $0xb0] sm:$0xff]
    %v66 = vld [vmem:[#allocation5 + $0xb8] sm:$0xff]
    %v67 = vld [vmem:[#allocation5 + $0xc0] sm:$0xff]
    %v68 = vld [vmem:[#allocation5 + $0xc8] sm:$0xff]
    %v69 = vld [vmem:[#allocation5 + $0xd0] sm:$0xff]
    %v70 = vld [vmem:[#allocation5 + $0xd8] sm:$0xff]
    %v71 = vld [vmem:[#allocation5 + $0xe0] sm:$0xff]
    %v72 = vld [vmem:[#allocation5 + $0xe8] sm:$0xff]
    %v73 = vld [vmem:[#allocation5 + $0xf0] sm:$0xff]
    %v74 = vld [vmem:[#allocation5 + $0xf8] sm:$0xff]
    %v75 = vld [vmem:[#allocation5 + $0x100] sm:$0xff]
    %vm76 = vcmask 64512
    %v78 = vsel %vm76, %v42, 0
    %80 = vmatpush.msra.mxu0 0.0
    %81 = vmatpush.msra.mxu0 0.0
    %82 = vmatpush.msra.mxu0 0.0
    %83 = vmatpush.msra.mxu0 0.0
    %84 = vmatpush.msra.mxu0 0.0
    %85 = vmatpush.msra.mxu0 0.0
    %86 = vmatpush.msra.mxu0 0.0
    %87 = vmatpush.msra.mxu0 0.0
    %88 = vmatpush.msra.mxu0 0.0
    %89 = vmatpush.msra.mxu0 0.0
    %90 = vmatpush.msra.mxu0 0.0
    %91 = vmatpush.msra.mxu0 0.0
    %92 = vmatpush.msra.mxu0 0.0
    %93 = vmatpush.msra.mxu0 0.0
    %94 = vmatpush.msra.mxu0 0.0
    %95 = vmatpush.msra.mxu0 %v43
    %96 = vmatmul.f32.gmra.mxu0 %v78
    %v97 = vpop.f32.mrf.mxu0
    %v98 = vadd.f32 0.0, %v97
    %99 = vdwg.mxu0
    %v100 = vmax.f32 %v98, 0.0
    %101 = vmatpush.msra.mxu0 %v59
    %102 = vmatpush.msra.mxu0 %v58
    %103 = vmatpush.msra.mxu0 %v57
    %104 = vmatpush.msra.mxu0 %v56
    %105 = vmatpush.msra.mxu0 %v55
    %106 = vmatpush.msra.mxu0 %v54
    %107 = vmatpush.msra.mxu0 %v53
    %108 = vmatpush.msra.mxu0 %v52
    %109 = vmatpush.msra.mxu0 %v51
    %110 = vmatpush.msra.mxu0 %v50
    %111 = vmatpush.msra.mxu0 %v49
    %112 = vmatpush.msra.mxu0 %v48
    %113 = vmatpush.msra.mxu0 %v47
    %114 = vmatpush.msra.mxu0 %v46
    %115 = vmatpush.msra.mxu0 %v45
    %116 = vmatpush.msra.mxu0 %v44
    %117 = vmatmul.f32.gmra.mxu0 %v100
    %v118 = vpop.f32.mrf.mxu0
    %v119 = vadd.f32 0.0, %v118
    %120 = vdwg.mxu0
    %v121 = vmax.f32 %v119, 0.0
    %122 = vmatpush.msra.mxu0 %v75
    %123 = vmatpush.msra.mxu0 %v74
    %124 = vmatpush.msra.mxu0 %v73
    %125 = vmatpush.msra.mxu0 %v72
    %126 = vmatpush.msra.mxu0 %v71
    %127 = vmatpush.msra.mxu0 %v70
    %128 = vmatpush.msra.mxu0 %v69
    %129 = vmatpush.msra.mxu0 %v68
    %130 = vmatpush.msra.mxu0 %v67
    %131 = vmatpush.msra.mxu0 %v66
    %132 = vmatpush.msra.mxu0 %v65
    %133 = vmatpush.msra.mxu0 %v64
    %134 = vmatpush.msra.mxu0 %v63
    %135 = vmatpush.msra.mxu0 %v62
    %136 = vmatpush.msra.mxu0 %v61
    %137 = vmatpush.msra.mxu0 %v60
    %138 = vmatmul.f32.gmra.mxu0 %v121
    %v139 = vpop.f32.mrf.mxu0
    %v140 = vadd.f32 0.0, %v139
    %141 = vdwg.mxu0
    %142 = vst [vmem:[#allocation7] sm:$0xff] %v140
    // Predicated region
    $region18: #{tpu_custom_call.1} parent=1 // pred_check
      _
    $region19: #{tpu_custom_call.1} parent=1 // pred_check_branch
      %144 = sbr.rel (0) target = $region21
    $region20: #{tpu_custom_call.1} parent=1 // pred_region
      %146 = vsyncadd [#allocation4], 0
      %s148 = sshll.u32 [#allocation7], 4
      %s149 = int_to_ptr.vmem [resolvable:$true] %s148
      %s150 = sshll.u32 %s2, 4
      %s151 = int_to_ptr.hbm [resolvable:$true] %s150
      %153 = dma.vmem_to_hbm [thread:$0]  %s149, 128, %s151, [#allocation4]
    $region21: #{tpu_custom_call.1} parent=1 // pred_fallthru
      _
    // Predicated region
    $region22: #{tpu_custom_call.1} parent=1 // pred_check
      _
    $region23: #{tpu_custom_call.1} parent=1 // pred_check_branch
      %155 = sbr.rel (0) target = $region25
    $region24: #{tpu_custom_call.1} parent=1 // pred_region
      %157 = dma.done [#allocation4], 128
    $region25: #{tpu_custom_call.1} parent=1 // pred_fallthru
      _
    %158 = vsyncpa [#allocation3], 1
    %159 = vsyncpa [#allocation6], 1
    %160 = vsyncpa [#allocation4], 1

</llo_original>
